<compile_context>
chip_gen: v7x
topology: tpu7x:2x2x1
jax: 0.10.0
libtpu: 0.0.40
codegen_flags: <defaults>
</compile_context>

<pallas_src>
import jax
import jax.numpy as jnp
from jax.experimental import pallas as pl
from jax.experimental.pallas import tpu as pltpu


def _mlp_kernel(x_ref, w1_ref, b1_ref, w2_ref, b2_ref, w3_ref, b3_ref, o_ref):
    # One batch tile of the fused MLP: 3 MXU matmuls (bf16 operands, f32
    # accumulation) + bias adds / ReLUs on the VPU.  Intermediates stay in VMEM.
    x = x_ref[...]                                                    # (TB, in)  bf16

    h1 = jnp.dot(x, w1_ref[...], preferred_element_type=jnp.float32) + b1_ref[...]
    h1 = jnp.maximum(h1, 0.0).astype(jnp.bfloat16)                    # (TB, 64)

    h2 = jnp.dot(h1, w2_ref[...], preferred_element_type=jnp.float32) + b2_ref[...]
    h2 = jnp.maximum(h2, 0.0).astype(jnp.bfloat16)                    # (TB, 32)

    out = jnp.dot(h2, w3_ref[...], preferred_element_type=jnp.float32) + b3_ref[...]
    o_ref[...] = out.astype(o_ref.dtype)                              # (TB, out) f32


# Max rows per grid step.  At in_dim=32 (bf16) this is ~64 KiB per x buffer,
# so even double-buffered it is tiny vs. VMEM on v5e/v6e (128 MiB) and v7x (64 MiB).
_TB_MAX = 1024


def simple_mlp(x, params):
    w1, b1, w2, b2, w3, b3 = params
    batch, in_dim = x.shape
    out_dim = w3.shape[1]

    # Batch tile: as large as reasonable (amortizes per-grid-step overhead),
    # while respecting the (8,128) rule: block_shape[-2] must be divisible by 8
    # OR equal the full dim.  batch <= _TB_MAX -> single full-extent block
    # (always legal); otherwise a 1024-row tile (divisible by 8; Pallas masks
    # the ragged tail block).
    tb = batch if batch <= _TB_MAX else _TB_MAX
    grid = (pl.cdiv(batch, tb),)

    # bf16 for the bandwidth-dominant operands; biases / accumulator / output f32.
    x_bf = x.astype(jnp.bfloat16)
    w1_bf, w2_bf, w3_bf = (w.astype(jnp.bfloat16) for w in (w1, w2, w3))

    vmem = pltpu.MemorySpace.VMEM
    tiled = lambda shape, imap: pl.BlockSpec(shape, imap, memory_space=vmem)
    resident = lambda shape: pl.BlockSpec(shape, lambda i: (0, 0), memory_space=vmem)

    return pl.pallas_call(
        _mlp_kernel,
        out_shape=jax.ShapeDtypeStruct((batch, out_dim), jnp.float32),
        grid=grid,
        in_specs=[
            tiled((tb, in_dim), lambda i: (i, 0)),          # x: tiled over batch
            resident(w1_bf.shape), resident(b1.shape),      # params: DMA'd once,
            resident(w2_bf.shape), resident(b2.shape),      # VMEM-resident across
            resident(w3_bf.shape), resident(b3.shape),      # the whole grid
        ],
        out_specs=tiled((tb, out_dim), lambda i: (i, 0)),
        compiler_params=pltpu.CompilerParams(
            dimension_semantics=("parallel",),              # megacore sharding on v7x
        ),
    )(x_bf, w1_bf, b1, w2_bf, b2, w3_bf, b3)


def init_params(key, in_dim, out_dim):
    """Deterministic init mimicking nn.Linear (uniform +/- 1/sqrt(fan_in)).

    Weights stored as (fan_in, fan_out) so y = x @ W + b matches PyTorch's
    y = x @ W_pt.T + b; biases kept 2-D (1, fan_out) for lane broadcast.
    """
    dims = [(in_dim, 64), (64, 32), (32, out_dim)]
    params = []
    for i, (fi, fo) in enumerate(dims):
        kw, kb = jax.random.split(jax.random.fold_in(key, i))
        bound = 1.0 / jnp.sqrt(fi)
        w = jax.random.uniform(kw, (fi, fo), jnp.float32, -bound, bound)
        b = jax.random.uniform(kb, (1, fo), jnp.float32, -bound, bound)
        params += [w, b]
    return tuple(params)


def _reference_f32(x, params):
    """Full-precision forward pass (the PyTorch-equivalent semantics)."""
    w1, b1, w2, b2, w3, b3 = params
    h = jnp.maximum(x @ w1 + b1, 0.0)
    h = jnp.maximum(h @ w2 + b2, 0.0)
    return h @ w3 + b3


def _reference_bf16(x, params):
    """Reference that mirrors the kernel's mixed precision exactly."""
    w1, b1, w2, b2, w3, b3 = params
    bf = jnp.bfloat16
    h = jnp.dot(x.astype(bf), w1.astype(bf), preferred_element_type=jnp.float32) + b1
    h = jnp.maximum(h, 0.0).astype(bf)
    h = jnp.dot(h, w2.astype(bf), preferred_element_type=jnp.float32) + b2
    h = jnp.maximum(h, 0.0).astype(bf)
    return jnp.dot(h, w3.astype(bf), preferred_element_type=jnp.float32) + b3


if __name__ == "__main__":
    in_dim, out_dim, batch = 32, 16, 8

    key = jax.random.PRNGKey(0)
    kx, kp = jax.random.split(key)
    x = jax.random.normal(kx, (batch, in_dim), jnp.float32)
    params = init_params(kp, in_dim, out_dim)

    out = jax.block_until_ready(simple_mlp(x, params))
    assert out.shape == (batch, out_dim)
    assert out.dtype == jnp.float32

    # Tight check vs. a reference with the same bf16 operand quantization.
    ref_bf = _reference_bf16(x, params)
    assert jnp.allclose(out, ref_bf, atol=1e-3, rtol=1e-3)

    # Loose check vs. the full-f32 PyTorch-equivalent forward pass.
    ref_f32 = _reference_f32(x, params)
    assert jnp.allclose(out, ref_f32, atol=5e-2, rtol=5e-2)

    print("KERNEL_OK")
</pallas_src>

<mosaic_0001>
module attributes {stable_mosaic.version = 11 : i64} {
  func.func @_mlp_kernel(%arg0: i32, %arg1: memref<8x32xbf16, #tpu.memory_space<vmem>>, %arg2: memref<32x64xbf16, #tpu.memory_space<vmem>>, %arg3: memref<1x64xf32, #tpu.memory_space<vmem>>, %arg4: memref<64x32xbf16, #tpu.memory_space<vmem>>, %arg5: memref<1x32xf32, #tpu.memory_space<vmem>>, %arg6: memref<32x16xbf16, #tpu.memory_space<vmem>>, %arg7: memref<1x16xf32, #tpu.memory_space<vmem>>, %arg8: memref<8x16xf32, #tpu.memory_space<vmem>>) attributes {dimension_semantics = [#tpu.dimension_semantics<parallel>], iteration_bounds = array<i64: 1>, scalar_prefetch = 0 : i64, scratch_operands = 0 : i64, tpu.core_type = #tpu.core_type<tc>, window_params = [{transform_indices = @transform_0, window_bounds = array<i64: 8, 32>}, {pipeline_mode = #tpu.pipeline_mode<synchronous>, transform_indices = @transform_1, window_bounds = array<i64: 32, 64>}, {pipeline_mode = #tpu.pipeline_mode<synchronous>, transform_indices = @transform_2, window_bounds = array<i64: 1, 64>}, {pipeline_mode = #tpu.pipeline_mode<synchronous>, transform_indices = @transform_3, window_bounds = array<i64: 64, 32>}, {pipeline_mode = #tpu.pipeline_mode<synchronous>, transform_indices = @transform_4, window_bounds = array<i64: 1, 32>}, {pipeline_mode = #tpu.pipeline_mode<synchronous>, transform_indices = @transform_5, window_bounds = array<i64: 32, 16>}, {pipeline_mode = #tpu.pipeline_mode<synchronous>, transform_indices = @transform_6, window_bounds = array<i64: 1, 16>}, {transform_indices = @transform_7, window_bounds = array<i64: 8, 16>}]} {
    %c0 = arith.constant 0 : index
    %c0_0 = arith.constant 0 : index
    %0 = vector.load %arg1[%c0, %c0_0] : memref<8x32xbf16, #tpu.memory_space<vmem>>, vector<8x32xbf16>
    %c0_1 = arith.constant 0 : index
    %c0_2 = arith.constant 0 : index
    %1 = vector.load %arg2[%c0_1, %c0_2] : memref<32x64xbf16, #tpu.memory_space<vmem>>, vector<32x64xbf16>
    %cst = arith.constant dense<0.000000e+00> : vector<8x64xf32>
    %2 = tpu.matmul %0, %1, %cst {dimension_numbers = #tpu.dot_dimension_numbers<[1], [0], [0], [1], [0, 0, 1, 1], [], []>} : vector<8x32xbf16>, vector<32x64xbf16>, vector<8x64xf32> -> vector<8x64xf32>
    %c0_3 = arith.constant 0 : index
    %c0_4 = arith.constant 0 : index
    %3 = vector.load %arg3[%c0_3, %c0_4] : memref<1x64xf32, #tpu.memory_space<vmem>>, vector<1x64xf32>
    %4 = vector.broadcast %3 : vector<1x64xf32> to vector<8x64xf32>
    %5 = arith.addf %2, %4 : vector<8x64xf32>
    %cst_5 = arith.constant 0.000000e+00 : f32
    %6 = vector.broadcast %cst_5 : f32 to vector<8x64xf32>
    %7 = arith.maximumf %5, %6 : vector<8x64xf32>
    %8 = arith.truncf %7 : vector<8x64xf32> to vector<8x64xbf16>
    %c0_6 = arith.constant 0 : index
    %c0_7 = arith.constant 0 : index
    %9 = vector.load %arg4[%c0_6, %c0_7] : memref<64x32xbf16, #tpu.memory_space<vmem>>, vector<64x32xbf16>
    %cst_8 = arith.constant dense<0.000000e+00> : vector<8x32xf32>
    %10 = tpu.matmul %8, %9, %cst_8 {dimension_numbers = #tpu.dot_dimension_numbers<[1], [0], [0], [1], [0, 0, 1, 1], [], []>} : vector<8x64xbf16>, vector<64x32xbf16>, vector<8x32xf32> -> vector<8x32xf32>
    %c0_9 = arith.constant 0 : index
    %c0_10 = arith.constant 0 : index
    %11 = vector.load %arg5[%c0_9, %c0_10] : memref<1x32xf32, #tpu.memory_space<vmem>>, vector<1x32xf32>
    %12 = vector.broadcast %11 : vector<1x32xf32> to vector<8x32xf32>
    %13 = arith.addf %10, %12 : vector<8x32xf32>
    %cst_11 = arith.constant 0.000000e+00 : f32
    %14 = vector.broadcast %cst_11 : f32 to vector<8x32xf32>
    %15 = arith.maximumf %13, %14 : vector<8x32xf32>
    %16 = arith.truncf %15 : vector<8x32xf32> to vector<8x32xbf16>
    %c0_12 = arith.constant 0 : index
    %c0_13 = arith.constant 0 : index
    %17 = vector.load %arg6[%c0_12, %c0_13] : memref<32x16xbf16, #tpu.memory_space<vmem>>, vector<32x16xbf16>
    %cst_14 = arith.constant dense<0.000000e+00> : vector<8x16xf32>
    %18 = tpu.matmul %16, %17, %cst_14 {dimension_numbers = #tpu.dot_dimension_numbers<[1], [0], [0], [1], [0, 0, 1, 1], [], []>} : vector<8x32xbf16>, vector<32x16xbf16>, vector<8x16xf32> -> vector<8x16xf32>
    %c0_15 = arith.constant 0 : index
    %c0_16 = arith.constant 0 : index
    %19 = vector.load %arg7[%c0_15, %c0_16] : memref<1x16xf32, #tpu.memory_space<vmem>>, vector<1x16xf32>
    %20 = vector.broadcast %19 : vector<1x16xf32> to vector<8x16xf32>
    %21 = arith.addf %18, %20 : vector<8x16xf32>
    %c0_17 = arith.constant 0 : index
    %c0_18 = arith.constant 0 : index
    %22 = vector.load %arg8[%c0_17, %c0_18] : memref<8x16xf32, #tpu.memory_space<vmem>>, vector<8x16xf32>
    tpu.vector_store %arg8[%c0_17, %c0_18], %21 {strides = array<i32>} : memref<8x16xf32, #tpu.memory_space<vmem>>, vector<8x16xf32>,
    return
  }
  func.func @transform_0(%arg0: i32) -> (i32, i32) {
    %c0_i32 = arith.constant 0 : i32
    %c0_i32_0 = arith.constant 0 : i32
    return %arg0, %c0_i32 : i32, i32
  }
  func.func @transform_1(%arg0: i32) -> (i32, i32) {
    %c0_i32 = arith.constant 0 : i32
    %c0_i32_0 = arith.constant 0 : i32
    %c0_i32_1 = arith.constant 0 : i32
    return %c0_i32, %c0_i32_0 : i32, i32
  }
  func.func @transform_2(%arg0: i32) -> (i32, i32) {
    %c0_i32 = arith.constant 0 : i32
    %c0_i32_0 = arith.constant 0 : i32
    %c0_i32_1 = arith.constant 0 : i32
    return %c0_i32, %c0_i32_0 : i32, i32
  }
  func.func @transform_3(%arg0: i32) -> (i32, i32) {
    %c0_i32 = arith.constant 0 : i32
    %c0_i32_0 = arith.constant 0 : i32
    %c0_i32_1 = arith.constant 0 : i32
    return %c0_i32, %c0_i32_0 : i32, i32
  }
  func.func @transform_4(%arg0: i32) -> (i32, i32) {
    %c0_i32 = arith.constant 0 : i32
    %c0_i32_0 = arith.constant 0 : i32
    %c0_i32_1 = arith.constant 0 : i32
    return %c0_i32, %c0_i32_0 : i32, i32
  }
  func.func @transform_5(%arg0: i32) -> (i32, i32) {
    %c0_i32 = arith.constant 0 : i32
    %c0_i32_0 = arith.constant 0 : i32
    %c0_i32_1 = arith.constant 0 : i32
    return %c0_i32, %c0_i32_0 : i32, i32
  }
  func.func @transform_6(%arg0: i32) -> (i32, i32) {
    %c0_i32 = arith.constant 0 : i32
    %c0_i32_0 = arith.constant 0 : i32
    %c0_i32_1 = arith.constant 0 : i32
    return %c0_i32, %c0_i32_0 : i32, i32
  }
  func.func @transform_7(%arg0: i32) -> (i32, i32) {
    %c0_i32 = arith.constant 0 : i32
    %c0_i32_0 = arith.constant 0 : i32
    return %arg0, %c0_i32 : i32, i32
  }
}

</mosaic_0001>

<llo_original>
// kernel: tpu_custom_call.1
$region0: #{tpu_custom_call.1}
  #allocation0 [shape = 'u32[]', space=smem, size = 0x4, offset = 0x4, fixed_abs, tag = 'smem constant byte address 0x4 - core index']
  #allocation1 [shape = 'u32[144,128]{1,0:T(1,128)}', space=vmem, size = 0x12000, scoped, tag = 'internal scratch']
  %s0 = inlined_call_operand.vmem [shape: bf16[8,32], index: 0, kind: input, shape index: {}]
  %s1 = inlined_call_operand.vmem [shape: bf16[32,64], index: 1, kind: input, shape index: {}]
  %s2 = inlined_call_operand.vmem [shape: f32[1,64], index: 2, kind: input, shape index: {}]
  %s3 = inlined_call_operand.vmem [shape: bf16[64,32], index: 3, kind: input, shape index: {}]
  %s4 = inlined_call_operand.vmem [shape: f32[1,32], index: 4, kind: input, shape index: {}]
  %s5 = inlined_call_operand.vmem [shape: bf16[32,16], index: 5, kind: input, shape index: {}]
  %s6 = inlined_call_operand.vmem [shape: f32[1,16], index: 6, kind: input, shape index: {}]
  %s7 = inlined_call_operand.hbm [shape: f32[8,16], index: 7, kind: output, shape index: {}]
  %s8 = sld [smem:[#allocation0]]
  $region38: #{tpu_custom_call.1} parent=0
    _
  %s10 = ssub.s32 1, %s8
  %s11 = scalar_select 0, %s10, %s8
  $region1: #{tpu_custom_call.1} parent=0
    #allocation2 [shape = 'u8[4096]{0}', space=vmem, size = 0x1000, scoped, tag = 'output window, operand 0, single buffered']
    #allocation3 [shape = 's32[1]{0}', space=sflag, size = 0x4, scoped, tag = 'scoped memory for tpu_custom_call.1']
    %12 = vsyncpa [#allocation3], 0
    // Predicated region
    $region2: #{tpu_custom_call.1} parent=1 // pred_check
      _
    $region3: #{tpu_custom_call.1} parent=1 // pred_check_branch
      %14 = sbr.rel (0) target = $region5
    $region4: #{tpu_custom_call.1} parent=1 // pred_region
      _
    $region5: #{tpu_custom_call.1} parent=1 // pred_fallthru
      _
    // Predicated region
    $region6: #{tpu_custom_call.1} parent=1 // pred_check
      _
    $region7: #{tpu_custom_call.1} parent=1 // pred_check_branch
      %16 = sbr.rel (0) target = $region9
    $region8: #{tpu_custom_call.1} parent=1 // pred_region
      _
    $region9: #{tpu_custom_call.1} parent=1 // pred_fallthru
      _
    // Predicated region
    $region10: #{tpu_custom_call.1} parent=1 // pred_check
      _
    $region11: #{tpu_custom_call.1} parent=1 // pred_check_branch
      %18 = sbr.rel (0) target = $region13
    $region12: #{tpu_custom_call.1} parent=1 // pred_region
      _
    $region13: #{tpu_custom_call.1} parent=1 // pred_fallthru
      _
    // Predicated region
    $region14: #{tpu_custom_call.1} parent=1 // pred_check
      _
    $region15: #{tpu_custom_call.1} parent=1 // pred_check_branch
      %20 = sbr.rel (0) target = $region17
    $region16: #{tpu_custom_call.1} parent=1 // pred_region
      _
    $region17: #{tpu_custom_call.1} parent=1 // pred_fallthru
      _
    // Predicated region
    $region18: #{tpu_custom_call.1} parent=1 // pred_check
      _
    $region19: #{tpu_custom_call.1} parent=1 // pred_check_branch
      %22 = sbr.rel (0) target = $region21
    $region20: #{tpu_custom_call.1} parent=1 // pred_region
      _
    $region21: #{tpu_custom_call.1} parent=1 // pred_fallthru
      _
    // Predicated region
    $region22: #{tpu_custom_call.1} parent=1 // pred_check
      _
    $region23: #{tpu_custom_call.1} parent=1 // pred_check_branch
      %24 = sbr.rel (0) target = $region25
    $region24: #{tpu_custom_call.1} parent=1 // pred_region
      _
    $region25: #{tpu_custom_call.1} parent=1 // pred_fallthru
      _
    // Predicated region
    $region26: #{tpu_custom_call.1} parent=1 // pred_check
      _
    $region27: #{tpu_custom_call.1} parent=1 // pred_check_branch
      %26 = sbr.rel (0) target = $region29
    $region28: #{tpu_custom_call.1} parent=1 // pred_region
      _
    $region29: #{tpu_custom_call.1} parent=1 // pred_fallthru
      _
    %v28 = vld [vmem:[%s0] sm:$0xf]
    %v29 = vld [vmem:[%s1] sm:$0xf]
    %v30 = vld [vmem:[%s1 + $0x4] sm:$0xf]
    %v31 = vld [vmem:[%s1 + $0x8] sm:$0xf]
    %v32 = vld [vmem:[%s1 + $0xc] sm:$0xf]
    %v33 = vld [vmem:[%s2] sm:$0x1]
    %v35 = vlaneseq
    %v36 = vshrl.u32 %v35, 7
    %v37 = vsub.s32 0, %v36
    %v38 = vrot.slane %v33, %v37
    %v44 = vunpack.c.l.b16 %v29
    %v45 = vunpack.c.l.b16 %v30
    %v46 = vunpack.c.l.b16 %v31
    %v47 = vunpack.c.l.b16 %v32
    %v48 = vpack.c.b16 %v45, %v44
    %v49 = vpack.c.b16 %v47, %v46
    %vm52 = vcmask 261120
    %v54 = vsel %vm52, %v28, 0
    %56 = vmatprep.subr.bf16.mxu0 0
    %57 = vmatpush1.bf16.msra.mxu0 %v48
    %58 = vmatprep.subr.bf16.mxu0 0
    %59 = vmatpush1.bf16.msra.mxu0 %v49
    %60 = vmatprep.subr.bf16.mxu0 0
    %61 = vmatpush1.bf16.msra.mxu0 0
    %62 = vmatprep.subr.bf16.mxu0 0
    %63 = vmatpush1.bf16.msra.mxu0 0
    %64 = vmatprep.subr.bf16.mxu0 0
    %65 = vmatpush1.bf16.msra.mxu0 0
    %66 = vmatprep.subr.bf16.mxu0 0
    %67 = vmatpush1.bf16.msra.mxu0 0
    %68 = vmatprep.subr.bf16.mxu0 0
    %69 = vmatpush1.bf16.msra.mxu0 0
    %70 = vmatprep.subr.bf16.mxu0 0
    %71 = vmatpush1.bf16.msra.mxu0 0
    %72 = vmatprep.subr.bf16.mxu0 0
    %73 = vmatpush1.bf16.msra.mxu0 0
    %74 = vmatprep.subr.bf16.mxu0 0
    %75 = vmatpush1.bf16.msra.mxu0 0
    %76 = vmatprep.subr.bf16.mxu0 0
    %77 = vmatpush1.bf16.msra.mxu0 0
    %78 = vmatprep.subr.bf16.mxu0 0
    %79 = vmatpush1.bf16.msra.mxu0 0
    %80 = vmatprep.subr.bf16.mxu0 0
    %81 = vmatpush1.bf16.msra.mxu0 0
    %82 = vmatprep.subr.bf16.mxu0 0
    %83 = vmatpush1.bf16.msra.mxu0 0
    %84 = vmatprep.subr.bf16.mxu0 0
    %85 = vmatpush1.bf16.msra.mxu0 0
    %86 = vmatprep.subr.bf16.mxu0 0
    %87 = vmatpush1.bf16.msra.mxu0 0
    %88 = vmatprep.mubr.bf16.mxu0 0
    %89 = vmatmul.mubr.bf16.gmra.mrb[0].mxu0 %v54
    %v90 = vpop.f32.mrb[0].mxu0
    %v91 = vadd.f32 %v38, %v90
    %v92 = vpop.f32.mrb[0].mxu0
    %v93 = vpop.f32.mrb[0].mxu0
    %v94 = vpop.f32.mrb[0].mxu0
    %95 = vdwg.mxu0
    %v96 = vmax.f32 %v91, 0.0
    %v97 = vpack.c.bf16 %v96, %v96
    %v98 = vld [vmem:[%s3] sm:$0xf]
    %v99 = vld [vmem:[%s3 + $0x4] sm:$0xf]
    %v100 = vld [vmem:[%s3 + $0x8] sm:$0xf]
    %v101 = vld [vmem:[%s3 + $0xc] sm:$0xf]
    %v102 = vld [vmem:[%s3 + $0x10] sm:$0xf]
    %v103 = vld [vmem:[%s3 + $0x14] sm:$0xf]
    %v104 = vld [vmem:[%s3 + $0x18] sm:$0xf]
    %v105 = vld [vmem:[%s3 + $0x1c] sm:$0xf]
    %v106 = vld [vmem:[%s4] sm:$0x1]
    %v108 = vlaneseq
    %v109 = vshrl.u32 %v108, 7
    %v110 = vsub.s32 0, %v109
    %v111 = vrot.slane %v106, %v110
    %v121 = vunpack.c.l.b16 %v98
    %v122 = vunpack.c.l.b16 %v99
    %v123 = vunpack.c.l.b16 %v100
    %v124 = vunpack.c.l.b16 %v101
    %v125 = vunpack.c.l.b16 %v102
    %v126 = vunpack.c.l.b16 %v103
    %v127 = vunpack.c.l.b16 %v104
    %v128 = vunpack.c.l.b16 %v105
    %v129 = vpack.c.b16 %v122, %v121
    %v130 = vpack.c.b16 %v124, %v123
    %v131 = vpack.c.b16 %v126, %v125
    %v132 = vpack.c.b16 %v128, %v127
    %vm137 = vcmask 523264
    %v139 = vsel %vm137, %v97, 0
    %141 = vmatprep.subr.bf16.mxu0 0
    %142 = vmatpush1.bf16.msra.mxu0 %v129
    %143 = vmatprep.subr.bf16.mxu0 0
    %144 = vmatpush1.bf16.msra.mxu0 %v130
    %145 = vmatprep.subr.bf16.mxu0 0
    %146 = vmatpush1.bf16.msra.mxu0 %v131
    %147 = vmatprep.subr.bf16.mxu0 0
    %148 = vmatpush1.bf16.msra.mxu0 %v132
    %149 = vmatprep.subr.bf16.mxu0 0
    %150 = vmatpush1.bf16.msra.mxu0 0
    %151 = vmatprep.subr.bf16.mxu0 0
    %152 = vmatpush1.bf16.msra.mxu0 0
    %153 = vmatprep.subr.bf16.mxu0 0
    %154 = vmatpush1.bf16.msra.mxu0 0
    %155 = vmatprep.subr.bf16.mxu0 0
    %156 = vmatpush1.bf16.msra.mxu0 0
    %157 = vmatprep.subr.bf16.mxu0 0
    %158 = vmatpush1.bf16.msra.mxu0 0
    %159 = vmatprep.subr.bf16.mxu0 0
    %160 = vmatpush1.bf16.msra.mxu0 0
    %161 = vmatprep.subr.bf16.mxu0 0
    %162 = vmatpush1.bf16.msra.mxu0 0
    %163 = vmatprep.subr.bf16.mxu0 0
    %164 = vmatpush1.bf16.msra.mxu0 0
    %165 = vmatprep.subr.bf16.mxu0 0
    %166 = vmatpush1.bf16.msra.mxu0 0
    %167 = vmatprep.subr.bf16.mxu0 0
    %168 = vmatpush1.bf16.msra.mxu0 0
    %169 = vmatprep.subr.bf16.mxu0 0
    %170 = vmatpush1.bf16.msra.mxu0 0
    %171 = vmatprep.subr.bf16.mxu0 0
    %172 = vmatpush1.bf16.msra.mxu0 0
    %173 = vmatprep.mubr.bf16.mxu0 0
    %174 = vmatmul.mubr.bf16.gmra.mrb[0].mxu0 %v139
    %v175 = vpop.f32.mrb[0].mxu0
    %v176 = vadd.f32 %v111, %v175
    %v177 = vpop.f32.mrb[0].mxu0
    %v178 = vpop.f32.mrb[0].mxu0
    %v179 = vpop.f32.mrb[0].mxu0
    %180 = vdwg.mxu0
    %v181 = vmax.f32 %v176, 0.0
    %v182 = vpack.c.bf16 %v181, %v181
    %v183 = vld [vmem:[%s5] sm:$0xf]
    %v184 = vld [vmem:[%s5 + $0x4] sm:$0xf]
    %v185 = vld [vmem:[%s5 + $0x8] sm:$0xf]
    %v186 = vld [vmem:[%s5 + $0xc] sm:$0xf]
    %v187 = vld [vmem:[%s6] sm:$0x1]
    %v189 = vlaneseq
    %v190 = vshrl.u32 %v189, 7
    %v191 = vsub.s32 0, %v190
    %v192 = vrot.slane %v187, %v191
    %v198 = vunpack.c.l.b16 %v183
    %v199 = vunpack.c.l.b16 %v184
    %v200 = vunpack.c.l.b16 %v185
    %v201 = vunpack.c.l.b16 %v186
    %v202 = vpack.c.b16 %v199, %v198
    %v203 = vpack.c.b16 %v201, %v200
    %v207 = vsel %vm52, %v182, 0
    %209 = vmatprep.subr.bf16.mxu0 0
    %210 = vmatpush1.bf16.msra.mxu0 %v202
    %211 = vmatprep.subr.bf16.mxu0 0
    %212 = vmatpush1.bf16.msra.mxu0 %v203
    %213 = vmatprep.subr.bf16.mxu0 0
    %214 = vmatpush1.bf16.msra.mxu0 0
    %215 = vmatprep.subr.bf16.mxu0 0
    %216 = vmatpush1.bf16.msra.mxu0 0
    %217 = vmatprep.subr.bf16.mxu0 0
    %218 = vmatpush1.bf16.msra.mxu0 0
    %219 = vmatprep.subr.bf16.mxu0 0
    %220 = vmatpush1.bf16.msra.mxu0 0
    %221 = vmatprep.subr.bf16.mxu0 0
    %222 = vmatpush1.bf16.msra.mxu0 0
    %223 = vmatprep.subr.bf16.mxu0 0
    %224 = vmatpush1.bf16.msra.mxu0 0
    %225 = vmatprep.subr.bf16.mxu0 0
    %226 = vmatpush1.bf16.msra.mxu0 0
    %227 = vmatprep.subr.bf16.mxu0 0
    %228 = vmatpush1.bf16.msra.mxu0 0
    %229 = vmatprep.subr.bf16.mxu0 0
    %230 = vmatpush1.bf16.msra.mxu0 0
    %231 = vmatprep.subr.bf16.mxu0 0
    %232 = vmatpush1.bf16.msra.mxu0 0
    %233 = vmatprep.subr.bf16.mxu0 0
    %234 = vmatpush1.bf16.msra.mxu0 0
    %235 = vmatprep.subr.bf16.mxu0 0
    %236 = vmatpush1.bf16.msra.mxu0 0
    %237 = vmatprep.subr.bf16.mxu0 0
    %238 = vmatpush1.bf16.msra.mxu0 0
    %239 = vmatprep.subr.bf16.mxu0 0
    %240 = vmatpush1.bf16.msra.mxu0 0
    %241 = vmatprep.mubr.bf16.mxu0 0
    %242 = vmatmul.mubr.bf16.gmra.mrb[0].mxu0 %v207
    %v243 = vpop.f32.mrb[0].mxu0
    %v244 = vadd.f32 %v192, %v243
    %v245 = vpop.f32.mrb[0].mxu0
    %v246 = vpop.f32.mrb[0].mxu0
    %v247 = vpop.f32.mrb[0].mxu0
    %248 = vdwg.mxu0
    %vm249 = vcmask 130048
    %250 = vst.msk [vmem:[#allocation2] sm:$0xff] %vm249, %v244
    // Predicated region
    $region30: #{tpu_custom_call.1} parent=1 // pred_check
      _
    $region31: #{tpu_custom_call.1} parent=1 // pred_check_branch
      %252 = sbr.rel (0) target = $region33
    $region32: #{tpu_custom_call.1} parent=1 // pred_region
      %s254 = ssub.s32 128, 128
      %255 = vsyncadd [#allocation3], %s254
      %s257 = sshll.u32 [#allocation2], 4
      %s258 = int_to_ptr.vmem [resolvable:$true] %s257
      %260 = dma.vmem_to_hbm [thread:$0]  %s258, 128, %s7, [#allocation3]
    $region33: #{tpu_custom_call.1} parent=1 // pred_fallthru
      _
    // Predicated region
    $region34: #{tpu_custom_call.1} parent=1 // pred_check
      _
    $region35: #{tpu_custom_call.1} parent=1 // pred_check_branch
      %262 = sbr.rel (0) target = $region37
    $region36: #{tpu_custom_call.1} parent=1 // pred_region
      %263 = dma.done [#allocation3], 128
    $region37: #{tpu_custom_call.1} parent=1 // pred_fallthru
      _
    %264 = vsyncpa [#allocation3], 1

</llo_original>
